<compile_context>
chip_gen: v7x
topology: tpu7x:2x2x1
jax: 0.10.0
libtpu: 0.0.40
codegen_flags: <defaults>
</compile_context>

<pallas_src>
import functools

import jax
import jax.numpy as jnp
from jax.experimental import pallas as pl
from jax.experimental.pallas import tpu as pltpu

IN_FEATURES = 784
H1, H2, OUT = 32, 16, 10


def _round_up(n, m):
    return ((n + m - 1) // m) * m


def _sigmoid(h, act_dtype):
    # sigmoid(x) = 0.5 * (1 + tanh(x/2)) -> one EUP transcendental (tanh) instead of
    # exp + divide; in bf16 (v6e/v7x) the EUP runs at double rate.
    h = h.astype(act_dtype)
    return 0.5 * (jnp.tanh(0.5 * h) + 1.0)


def stitched_mlp_kernel(x_ref, w1_ref, b1_ref, w2_ref, b2_ref, w3_ref, b3_ref,
                        o_ref, *, act_dtype):
    # x tile arrives f32 straight from HBM (no wrapper-side cast pass); the bf16
    # cast here is VPU work hidden under the input DMA.
    x = x_ref[...].astype(jnp.bfloat16)                                    # (TB, 784)

    h = jnp.dot(x, w1_ref[...], preferred_element_type=jnp.float32) + b1_ref[...]
    h = _sigmoid(h, act_dtype)                                             # (TB, 32)

    h = jnp.dot(h, w2_ref[...], preferred_element_type=jnp.float32) + b2_ref[...]
    h = _sigmoid(h, act_dtype)                                             # (TB, 16)

    h = jnp.dot(h, w3_ref[...], preferred_element_type=jnp.float32) + b3_ref[...]
    o_ref[...] = _sigmoid(h, jnp.float32)                                  # (TB, 10)


def _default_act_dtype():
    # bf16 VPU/EUP exists on v6e and newer; on v5e (and older) a bf16 activation
    # path only adds cast traffic, so stay f32 there.
    try:
        kind = jax.devices()[0].device_kind.lower()
    except Exception:
        return jnp.float32
    return jnp.bfloat16 if ("v6" in kind or "v7" in kind) else jnp.float32


def stitched_linear_net(x, params, *, block_batch=4096, act_dtype=None):
    """Forward pass of StitchedLinearNet.

    x: (bs, C, H, W) float32 with C*H*W == 784 (e.g. (bs, 1, 28, 28)).
    params: w1 (784,32), b1 (1,32), w2 (32,16), b2 (1,16), w3 (16,10), b3 (1,10),
            float32; weights stored as (in, out) so x @ W + b == nn.Linear's
            x @ W.T + b.
    Returns (bs, 10) float32.
    """
    if act_dtype is None:
        act_dtype = _default_act_dtype()

    bs = x.shape[0]
    x_flat = x.reshape(bs, -1)                      # == torch x.view(bs, -1); free
    assert x_flat.shape[1] == IN_FEATURES, "flattened feature dim must be 784"
    x_flat = x_flat.astype(jnp.float32)             # no-op for f32 inputs

    # First-layer weight bf16 (tiny, VMEM-resident); later layers in act_dtype.
    w1 = params["w1"].astype(jnp.bfloat16)
    b1 = params["b1"].astype(jnp.float32)
    w2 = params["w2"].astype(act_dtype)
    b2 = params["b2"].astype(jnp.float32)
    w3 = params["w3"].astype(act_dtype)
    b3 = params["b3"].astype(jnp.float32)

    # Batch tile: multiple of 16; capped near ceil(bs/2) so non-tiny batches get
    # >= 2 grid steps (v7x megacore); never larger than the batch (a block equal to
    # the full batch dim is always layout-legal).
    tb = _round_up(block_batch, 16)
    if bs > 16:
        tb = min(tb, _round_up(pl.cdiv(bs, 2), 16))
    if tb > bs:
        tb = bs
    grid = (pl.cdiv(bs, tb),)

    # VMEM budget: double-buffered f32 x tile + lane-padded out tile + in-kernel
    # bf16 copy + activations + weights/slack. ~47 MiB at TB=4096 (< v7x 64 MiB).
    vmem_bytes = (2 * tb * IN_FEATURES * 4          # x, double-buffered
                  + 2 * tb * 128 * 4                # out, padded to 128 lanes
                  + tb * IN_FEATURES * 2            # bf16 copy of x
                  + 4 * tb * 128 * 4                # activations (generous)
                  + (2 << 20))                      # weights/biases + slack
    vmem_bytes = int(min(max(vmem_bytes, 32 * 1024 * 1024), 96 * 1024 * 1024))

    const = lambda i: (0, 0)
    in_specs = [
        pl.BlockSpec((tb, IN_FEATURES), lambda i: (i, 0)),   # x tile (streamed)
        pl.BlockSpec((IN_FEATURES, H1), const),              # w1 (resident)
        pl.BlockSpec((1, H1), const),                        # b1
        pl.BlockSpec((H1, H2), const),                       # w2
        pl.BlockSpec((1, H2), const),                        # b2
        pl.BlockSpec((H2, OUT), const),                      # w3
        pl.BlockSpec((1, OUT), const),                       # b3
    ]
    out_spec = pl.BlockSpec((tb, OUT), lambda i: (i, 0))

    cost = pl.CostEstimate(
        flops=2 * bs * (IN_FEATURES * H1 + H1 * H2 + H2 * OUT),
        transcendentals=bs * (H1 + H2 + OUT),
        bytes_accessed=bs * IN_FEATURES * 4 + bs * OUT * 4 + IN_FEATURES * H1 * 2,
    )

    return pl.pallas_call(
        functools.partial(stitched_mlp_kernel, act_dtype=act_dtype),
        out_shape=jax.ShapeDtypeStruct((bs, OUT), jnp.float32),
        grid=grid,
        in_specs=in_specs,
        out_specs=out_spec,
        compiler_params=pltpu.CompilerParams(
            dimension_semantics=("parallel",),      # batch tiles shard across TCs
            vmem_limit_bytes=vmem_bytes,
        ),
        cost_estimate=cost,
    )(x_flat, w1, b1, w2, b2, w3, b3)


def init_params(key):
    """Deterministic init mimicking nn.Linear's U(-1/sqrt(fan_in), 1/sqrt(fan_in))."""
    ks = jax.random.split(key, 6)

    def linear(kw, kb, fan_in, fan_out):
        bound = 1.0 / jnp.sqrt(jnp.float32(fan_in))
        w = jax.random.uniform(kw, (fan_in, fan_out), jnp.float32, -bound, bound)
        b = jax.random.uniform(kb, (1, fan_out), jnp.float32, -bound, bound)
        return w, b

    w1, b1 = linear(ks[0], ks[1], IN_FEATURES, H1)
    w2, b2 = linear(ks[2], ks[3], H1, H2)
    w3, b3 = linear(ks[4], ks[5], H2, OUT)
    return {"w1": w1, "b1": b1, "w2": w2, "b2": b2, "w3": w3, "b3": b3}


def reference_forward(x, params, *, match_kernel=False, act_dtype=jnp.float32):
    """Pure-JAX reference. match_kernel=True mirrors the kernel numerics (bf16 first
    matmul, tanh-form sigmoid, act_dtype hidden activations); match_kernel=False is
    the full-f32 PyTorch-equivalent forward."""
    bs = x.shape[0]
    h = x.reshape(bs, -1).astype(jnp.float32)
    if not match_kernel:
        h1 = jax.nn.sigmoid(h @ params["w1"] + params["b1"])
        h2 = jax.nn.sigmoid(h1 @ params["w2"] + params["b2"])
        return jax.nn.sigmoid(h2 @ params["w3"] + params["b3"])

    def sig(v, dt):
        v = v.astype(dt)
        return 0.5 * (jnp.tanh(0.5 * v) + 1.0)

    h1 = sig(jnp.dot(h.astype(jnp.bfloat16), params["w1"].astype(jnp.bfloat16),
                     preferred_element_type=jnp.float32) + params["b1"], act_dtype)
    h2 = sig(jnp.dot(h1, params["w2"].astype(act_dtype),
                     preferred_element_type=jnp.float32) + params["b2"], act_dtype)
    h3 = jnp.dot(h2, params["w3"].astype(act_dtype),
                 preferred_element_type=jnp.float32) + params["b3"]
    return sig(h3, jnp.float32)


if __name__ == "__main__":
    key = jax.random.PRNGKey(0)
    k_x, k_x2, k_x3, k_p = jax.random.split(key, 4)
    params = init_params(k_p)
    auto_act = _default_act_dtype()

    # Small NCHW input consistent with the 784-feature flatten: (bs=2, 1, 28, 28).
    x = jax.random.normal(k_x, (2, 1, 28, 28), dtype=jnp.float32)
    out = jax.block_until_ready(stitched_linear_net(x, params))
    assert out.shape == (2, 10)
    assert jnp.allclose(out, reference_forward(x, params, match_kernel=True,
                                               act_dtype=auto_act),
                        atol=1e-2, rtol=0.0)
    assert jnp.allclose(out, reference_forward(x, params), atol=2.5e-2, rtol=0.0)

    # Ragged batch with a multi-step grid (no padding copy; partial last block's
    # garbage rows are discarded by the masked store).
    x2 = jax.random.normal(k_x2, (50, 1, 28, 28), dtype=jnp.float32)
    out2 = jax.block_until_ready(stitched_linear_net(x2, params, block_batch=16))
    assert out2.shape == (50, 10)
    assert jnp.allclose(out2, reference_forward(x2, params, match_kernel=True,
                                                act_dtype=auto_act),
                        atol=1e-2, rtol=0.0)

    # Forced f32-activation path (the v5e configuration) + the >=2-grid-step cap.
    x3 = jax.random.normal(k_x3, (40, 1, 28, 28), dtype=jnp.float32)
    out3 = jax.block_until_ready(
        stitched_linear_net(x3, params, act_dtype=jnp.float32))
    assert out3.shape == (40, 10)
    assert jnp.allclose(out3, reference_forward(x3, params, match_kernel=True,
                                                act_dtype=jnp.float32),
                        atol=1e-2, rtol=0.0)
    assert jnp.allclose(out3, reference_forward(x3, params), atol=2.5e-2, rtol=0.0)

    print("KERNEL_OK")
</pallas_src>

<mosaic_0001>
module attributes {stable_mosaic.version = 11 : i64} {
  func.func @stitched_mlp_kernel(%arg0: i32, %arg1: memref<2x784xf32, #tpu.memory_space<vmem>>, %arg2: memref<784x32xbf16, #tpu.memory_space<vmem>>, %arg3: memref<1x32xf32, #tpu.memory_space<vmem>>, %arg4: memref<32x16xf32, #tpu.memory_space<vmem>>, %arg5: memref<1x16xf32, #tpu.memory_space<vmem>>, %arg6: memref<16x10xf32, #tpu.memory_space<vmem>>, %arg7: memref<1x10xf32, #tpu.memory_space<vmem>>, %arg8: memref<2x10xf32, #tpu.memory_space<vmem>>) attributes {dimension_semantics = [#tpu.dimension_semantics<parallel>], iteration_bounds = array<i64: 1>, scalar_prefetch = 0 : i64, scratch_operands = 0 : i64, tpu.core_type = #tpu.core_type<tc>, window_params = [{transform_indices = @transform_0, window_bounds = array<i64: 2, 784>}, {pipeline_mode = #tpu.pipeline_mode<synchronous>, transform_indices = @transform_1, window_bounds = array<i64: 784, 32>}, {pipeline_mode = #tpu.pipeline_mode<synchronous>, transform_indices = @transform_2, window_bounds = array<i64: 1, 32>}, {pipeline_mode = #tpu.pipeline_mode<synchronous>, transform_indices = @transform_3, window_bounds = array<i64: 32, 16>}, {pipeline_mode = #tpu.pipeline_mode<synchronous>, transform_indices = @transform_4, window_bounds = array<i64: 1, 16>}, {pipeline_mode = #tpu.pipeline_mode<synchronous>, transform_indices = @transform_5, window_bounds = array<i64: 16, 10>}, {pipeline_mode = #tpu.pipeline_mode<synchronous>, transform_indices = @transform_6, window_bounds = array<i64: 1, 10>}, {transform_indices = @transform_7, window_bounds = array<i64: 2, 10>}]} {
    %c0 = arith.constant 0 : index
    %c0_0 = arith.constant 0 : index
    %0 = vector.load %arg1[%c0, %c0_0] : memref<2x784xf32, #tpu.memory_space<vmem>>, vector<2x784xf32>
    %1 = arith.truncf %0 : vector<2x784xf32> to vector<2x784xbf16>
    %c0_1 = arith.constant 0 : index
    %c0_2 = arith.constant 0 : index
    %2 = vector.load %arg2[%c0_1, %c0_2] : memref<784x32xbf16, #tpu.memory_space<vmem>>, vector<784x32xbf16>
    %cst = arith.constant dense<0.000000e+00> : vector<2x32xf32>
    %3 = tpu.matmul %1, %2, %cst {dimension_numbers = #tpu.dot_dimension_numbers<[1], [0], [0], [1], [0, 0, 1, 1], [], []>} : vector<2x784xbf16>, vector<784x32xbf16>, vector<2x32xf32> -> vector<2x32xf32>
    %c0_3 = arith.constant 0 : index
    %c0_4 = arith.constant 0 : index
    %4 = vector.load %arg3[%c0_3, %c0_4] : memref<1x32xf32, #tpu.memory_space<vmem>>, vector<1x32xf32>
    %5 = vector.broadcast %4 : vector<1x32xf32> to vector<2x32xf32>
    %6 = arith.addf %3, %5 : vector<2x32xf32>
    %cst_5 = arith.constant 5.000000e-01 : f32
    %7 = vector.broadcast %cst_5 : f32 to vector<2x32xf32>
    %8 = arith.mulf %7, %6 : vector<2x32xf32>
    %9 = math.tanh %8 : vector<2x32xf32>
    %cst_6 = arith.constant 1.000000e+00 : f32
    %10 = vector.broadcast %cst_6 : f32 to vector<2x32xf32>
    %11 = arith.addf %9, %10 : vector<2x32xf32>
    %cst_7 = arith.constant 5.000000e-01 : f32
    %12 = vector.broadcast %cst_7 : f32 to vector<2x32xf32>
    %13 = arith.mulf %12, %11 : vector<2x32xf32>
    %c0_8 = arith.constant 0 : index
    %c0_9 = arith.constant 0 : index
    %14 = vector.load %arg4[%c0_8, %c0_9] : memref<32x16xf32, #tpu.memory_space<vmem>>, vector<32x16xf32>
    %cst_10 = arith.constant dense<0.000000e+00> : vector<2x16xf32>
    %15 = tpu.matmul %13, %14, %cst_10 {dimension_numbers = #tpu.dot_dimension_numbers<[1], [0], [0], [1], [0, 0, 1, 1], [], []>} : vector<2x32xf32>, vector<32x16xf32>, vector<2x16xf32> -> vector<2x16xf32>
    %c0_11 = arith.constant 0 : index
    %c0_12 = arith.constant 0 : index
    %16 = vector.load %arg5[%c0_11, %c0_12] : memref<1x16xf32, #tpu.memory_space<vmem>>, vector<1x16xf32>
    %17 = vector.broadcast %16 : vector<1x16xf32> to vector<2x16xf32>
    %18 = arith.addf %15, %17 : vector<2x16xf32>
    %cst_13 = arith.constant 5.000000e-01 : f32
    %19 = vector.broadcast %cst_13 : f32 to vector<2x16xf32>
    %20 = arith.mulf %19, %18 : vector<2x16xf32>
    %21 = math.tanh %20 : vector<2x16xf32>
    %cst_14 = arith.constant 1.000000e+00 : f32
    %22 = vector.broadcast %cst_14 : f32 to vector<2x16xf32>
    %23 = arith.addf %21, %22 : vector<2x16xf32>
    %cst_15 = arith.constant 5.000000e-01 : f32
    %24 = vector.broadcast %cst_15 : f32 to vector<2x16xf32>
    %25 = arith.mulf %24, %23 : vector<2x16xf32>
    %c0_16 = arith.constant 0 : index
    %c0_17 = arith.constant 0 : index
    %26 = vector.load %arg6[%c0_16, %c0_17] : memref<16x10xf32, #tpu.memory_space<vmem>>, vector<16x10xf32>
    %cst_18 = arith.constant dense<0.000000e+00> : vector<2x10xf32>
    %27 = tpu.matmul %25, %26, %cst_18 {dimension_numbers = #tpu.dot_dimension_numbers<[1], [0], [0], [1], [0, 0, 1, 1], [], []>} : vector<2x16xf32>, vector<16x10xf32>, vector<2x10xf32> -> vector<2x10xf32>
    %c0_19 = arith.constant 0 : index
    %c0_20 = arith.constant 0 : index
    %28 = vector.load %arg7[%c0_19, %c0_20] : memref<1x10xf32, #tpu.memory_space<vmem>>, vector<1x10xf32>
    %29 = vector.broadcast %28 : vector<1x10xf32> to vector<2x10xf32>
    %30 = arith.addf %27, %29 : vector<2x10xf32>
    %cst_21 = arith.constant 5.000000e-01 : f32
    %31 = vector.broadcast %cst_21 : f32 to vector<2x10xf32>
    %32 = arith.mulf %31, %30 : vector<2x10xf32>
    %33 = math.tanh %32 : vector<2x10xf32>
    %cst_22 = arith.constant 1.000000e+00 : f32
    %34 = vector.broadcast %cst_22 : f32 to vector<2x10xf32>
    %35 = arith.addf %33, %34 : vector<2x10xf32>
    %cst_23 = arith.constant 5.000000e-01 : f32
    %36 = vector.broadcast %cst_23 : f32 to vector<2x10xf32>
    %37 = arith.mulf %36, %35 : vector<2x10xf32>
    %c0_24 = arith.constant 0 : index
    %c0_25 = arith.constant 0 : index
    %38 = vector.load %arg8[%c0_24, %c0_25] : memref<2x10xf32, #tpu.memory_space<vmem>>, vector<2x10xf32>
    tpu.vector_store %arg8[%c0_24, %c0_25], %37 {strides = array<i32>} : memref<2x10xf32, #tpu.memory_space<vmem>>, vector<2x10xf32>,
    return
  }
  func.func @transform_0(%arg0: i32) -> (i32, i32) {
    %c0_i32 = arith.constant 0 : i32
    %c0_i32_0 = arith.constant 0 : i32
    return %arg0, %c0_i32 : i32, i32
  }
  func.func @transform_1(%arg0: i32) -> (i32, i32) {
    %c0_i32 = arith.constant 0 : i32
    %c0_i32_0 = arith.constant 0 : i32
    %c0_i32_1 = arith.constant 0 : i32
    return %c0_i32, %c0_i32_0 : i32, i32
  }
  func.func @transform_2(%arg0: i32) -> (i32, i32) {
    %c0_i32 = arith.constant 0 : i32
    %c0_i32_0 = arith.constant 0 : i32
    %c0_i32_1 = arith.constant 0 : i32
    return %c0_i32, %c0_i32_0 : i32, i32
  }
  func.func @transform_3(%arg0: i32) -> (i32, i32) {
    %c0_i32 = arith.constant 0 : i32
    %c0_i32_0 = arith.constant 0 : i32
    %c0_i32_1 = arith.constant 0 : i32
    return %c0_i32, %c0_i32_0 : i32, i32
  }
  func.func @transform_4(%arg0: i32) -> (i32, i32) {
    %c0_i32 = arith.constant 0 : i32
    %c0_i32_0 = arith.constant 0 : i32
    %c0_i32_1 = arith.constant 0 : i32
    return %c0_i32, %c0_i32_0 : i32, i32
  }
  func.func @transform_5(%arg0: i32) -> (i32, i32) {
    %c0_i32 = arith.constant 0 : i32
    %c0_i32_0 = arith.constant 0 : i32
    %c0_i32_1 = arith.constant 0 : i32
    return %c0_i32, %c0_i32_0 : i32, i32
  }
  func.func @transform_6(%arg0: i32) -> (i32, i32) {
    %c0_i32 = arith.constant 0 : i32
    %c0_i32_0 = arith.constant 0 : i32
    %c0_i32_1 = arith.constant 0 : i32
    return %c0_i32, %c0_i32_0 : i32, i32
  }
  func.func @transform_7(%arg0: i32) -> (i32, i32) {
    %c0_i32 = arith.constant 0 : i32
    %c0_i32_0 = arith.constant 0 : i32
    return %arg0, %c0_i32 : i32, i32
  }
}

</mosaic_0001>

<llo_original>
// kernel: tpu_custom_call.1
$region0: #{tpu_custom_call.1}
  #allocation0 [shape = 'u32[]', space=smem, size = 0x4, offset = 0x4, fixed_abs, tag = 'smem constant byte address 0x4 - core index']
  #allocation1 [shape = 'u32[144,128]{1,0:T(1,128)}', space=vmem, size = 0x12000, scoped, tag = 'internal scratch']
  %s0 = inlined_call_operand.vmem [shape: f32[2,784], index: 0, kind: input, shape index: {}]
  %s1 = inlined_call_operand.vmem [shape: bf16[784,32], index: 1, kind: input, shape index: {}]
  %s2 = inlined_call_operand.vmem [shape: f32[1,32], index: 2, kind: input, shape index: {}]
  %s3 = inlined_call_operand.vmem [shape: f32[32,16], index: 3, kind: input, shape index: {}]
  %s4 = inlined_call_operand.vmem [shape: f32[1,16], index: 4, kind: input, shape index: {}]
  %s5 = inlined_call_operand.vmem [shape: f32[16,10], index: 5, kind: input, shape index: {}]
  %s6 = inlined_call_operand.vmem [shape: f32[1,10], index: 6, kind: input, shape index: {}]
  %s7 = inlined_call_operand.hbm [shape: f32[2,10], index: 7, kind: output, shape index: {}]
  %s8 = sld [smem:[#allocation0]]
  $region38: #{tpu_custom_call.1} parent=0
    _
  %s10 = ssub.s32 1, %s8
  %s11 = scalar_select 0, %s10, %s8
  $region1: #{tpu_custom_call.1} parent=0
    #allocation2 [shape = 'u8[1024]{0}', space=vmem, size = 0x400, scoped, tag = 'output window, operand 0, single buffered']
    #allocation3 [shape = 's32[1]{0}', space=sflag, size = 0x4, scoped, tag = 'scoped memory for tpu_custom_call.1']
    %12 = vsyncpa [#allocation3], 0
    // Predicated region
    $region2: #{tpu_custom_call.1} parent=1 // pred_check
      _
    $region3: #{tpu_custom_call.1} parent=1 // pred_check_branch
      %14 = sbr.rel (0) target = $region5
    $region4: #{tpu_custom_call.1} parent=1 // pred_region
      _
    $region5: #{tpu_custom_call.1} parent=1 // pred_fallthru
      _
    // Predicated region
    $region6: #{tpu_custom_call.1} parent=1 // pred_check
      _
    $region7: #{tpu_custom_call.1} parent=1 // pred_check_branch
      %16 = sbr.rel (0) target = $region9
    $region8: #{tpu_custom_call.1} parent=1 // pred_region
      _
    $region9: #{tpu_custom_call.1} parent=1 // pred_fallthru
      _
    // Predicated region
    $region10: #{tpu_custom_call.1} parent=1 // pred_check
      _
    $region11: #{tpu_custom_call.1} parent=1 // pred_check_branch
      %18 = sbr.rel (0) target = $region13
    $region12: #{tpu_custom_call.1} parent=1 // pred_region
      _
    $region13: #{tpu_custom_call.1} parent=1 // pred_fallthru
      _
    // Predicated region
    $region14: #{tpu_custom_call.1} parent=1 // pred_check
      _
    $region15: #{tpu_custom_call.1} parent=1 // pred_check_branch
      %20 = sbr.rel (0) target = $region17
    $region16: #{tpu_custom_call.1} parent=1 // pred_region
      _
    $region17: #{tpu_custom_call.1} parent=1 // pred_fallthru
      _
    // Predicated region
    $region18: #{tpu_custom_call.1} parent=1 // pred_check
      _
    $region19: #{tpu_custom_call.1} parent=1 // pred_check_branch
      %22 = sbr.rel (0) target = $region21
    $region20: #{tpu_custom_call.1} parent=1 // pred_region
      _
    $region21: #{tpu_custom_call.1} parent=1 // pred_fallthru
      _
    // Predicated region
    $region22: #{tpu_custom_call.1} parent=1 // pred_check
      _
    $region23: #{tpu_custom_call.1} parent=1 // pred_check_branch
      %24 = sbr.rel (0) target = $region25
    $region24: #{tpu_custom_call.1} parent=1 // pred_region
      _
    $region25: #{tpu_custom_call.1} parent=1 // pred_fallthru
      _
    // Predicated region
    $region26: #{tpu_custom_call.1} parent=1 // pred_check
      _
    $region27: #{tpu_custom_call.1} parent=1 // pred_check_branch
      %26 = sbr.rel (0) target = $region29
    $region28: #{tpu_custom_call.1} parent=1 // pred_region
      _
    $region29: #{tpu_custom_call.1} parent=1 // pred_fallthru
      _
    %v28 = vld [vmem:[%s0] sm:$0xff]
    %v29 = vld [vmem:[%s0 + $0x8] sm:$0x3f]
    %v32 = vcombine.high %v28, %v28
    %v34 = vunpack.c.l.s4 1983009808
    %v35 = vunpack.c.0.s8 %v34
    %v36 = vlaneseq
    %v37 = vshrl.u32 %v36, 7
    %v38 = vsub.s32 %v35, %v37
    %v39 = vrot.slane %v28, %v38
    %v41 = vunpack.c.l.s4 1983009808
    %v42 = vunpack.c.0.s8 %v41
    %v43 = vlaneseq
    %v44 = vshrl.u32 %v43, 7
    %v45 = vsub.s32 %v42, %v44
    %v46 = vrot.slane %v32, %v45
    %v47 = vcombine.high %v39, %v39
    %v48 = vcombine.high %v46, %v46
    %v49 = vcombine.high %v29, %v29
    %v51 = vunpack.c.l.s4 1983009808
    %v52 = vunpack.c.0.s8 %v51
    %v53 = vlaneseq
    %v54 = vshrl.u32 %v53, 7
    %v55 = vsub.s32 %v52, %v54
    %v56 = vrot.slane %v29, %v55
    %v58 = vunpack.c.l.s4 1983009808
    %v59 = vunpack.c.0.s8 %v58
    %v60 = vlaneseq
    %v61 = vshrl.u32 %v60, 7
    %v62 = vsub.s32 %v59, %v61
    %v63 = vrot.slane %v49, %v62
    %v64 = vcombine.high %v56, %v56
    %v72 = vpack.c.bf16 %v39, %v39
    %v73 = vpack.c.bf16 %v47, %v47
    %v74 = vpack.c.bf16 %v46, %v46
    %v75 = vpack.c.bf16 %v48, %v48
    %v76 = vpack.c.bf16 %v56, %v56
    %v77 = vpack.c.bf16 %v64, %v64
    %v78 = vpack.c.bf16 %v63, %v63
    %v79 = vld [vmem:[%s1] sm:$0xf]
    %v80 = vld [vmem:[%s1 + $0x4] sm:$0xf]
    %v81 = vld [vmem:[%s1 + $0x8] sm:$0xf]
    %v82 = vld [vmem:[%s1 + $0xc] sm:$0xf]
    %v83 = vld [vmem:[%s1 + $0x10] sm:$0xf]
    %v84 = vld [vmem:[%s1 + $0x14] sm:$0xf]
    %v85 = vld [vmem:[%s1 + $0x18] sm:$0xf]
    %v86 = vld [vmem:[%s1 + $0x1c] sm:$0xf]
    %v87 = vld [vmem:[%s1 + $0x20] sm:$0xf]
    %v88 = vld [vmem:[%s1 + $0x24] sm:$0xf]
    %v89 = vld [vmem:[%s1 + $0x28] sm:$0xf]
    %v90 = vld [vmem:[%s1 + $0x2c] sm:$0xf]
    %v91 = vld [vmem:[%s1 + $0x30] sm:$0xf]
    %v92 = vld [vmem:[%s1 + $0x34] sm:$0xf]
    %v93 = vld [vmem:[%s1 + $0x38] sm:$0xf]
    %v94 = vld [vmem:[%s1 + $0x3c] sm:$0xf]
    %v95 = vld [vmem:[%s1 + $0x40] sm:$0xf]
    %v96 = vld [vmem:[%s1 + $0x44] sm:$0xf]
    %v97 = vld [vmem:[%s1 + $0x48] sm:$0xf]
    %v98 = vld [vmem:[%s1 + $0x4c] sm:$0xf]
    %v99 = vld [vmem:[%s1 + $0x50] sm:$0xf]
    %v100 = vld [vmem:[%s1 + $0x54] sm:$0xf]
    %v101 = vld [vmem:[%s1 + $0x58] sm:$0xf]
    %v102 = vld [vmem:[%s1 + $0x5c] sm:$0xf]
    %v103 = vld [vmem:[%s1 + $0x60] sm:$0xf]
    %v104 = vld [vmem:[%s1 + $0x64] sm:$0xf]
    %v105 = vld [vmem:[%s1 + $0x68] sm:$0xf]
    %v106 = vld [vmem:[%s1 + $0x6c] sm:$0xf]
    %v107 = vld [vmem:[%s1 + $0x70] sm:$0xf]
    %v108 = vld [vmem:[%s1 + $0x74] sm:$0xf]
    %v109 = vld [vmem:[%s1 + $0x78] sm:$0xf]
    %v110 = vld [vmem:[%s1 + $0x7c] sm:$0xf]
    %v111 = vld [vmem:[%s1 + $0x80] sm:$0xf]
    %v112 = vld [vmem:[%s1 + $0x84] sm:$0xf]
    %v113 = vld [vmem:[%s1 + $0x88] sm:$0xf]
    %v114 = vld [vmem:[%s1 + $0x8c] sm:$0xf]
    %v115 = vld [vmem:[%s1 + $0x90] sm:$0xf]
    %v116 = vld [vmem:[%s1 + $0x94] sm:$0xf]
    %v117 = vld [vmem:[%s1 + $0x98] sm:$0xf]
    %v118 = vld [vmem:[%s1 + $0x9c] sm:$0xf]
    %v119 = vld [vmem:[%s1 + $0xa0] sm:$0xf]
    %v120 = vld [vmem:[%s1 + $0xa4] sm:$0xf]
    %v121 = vld [vmem:[%s1 + $0xa8] sm:$0xf]
    %v122 = vld [vmem:[%s1 + $0xac] sm:$0xf]
    %v123 = vld [vmem:[%s1 + $0xb0] sm:$0xf]
    %v124 = vld [vmem:[%s1 + $0xb4] sm:$0xf]
    %v125 = vld [vmem:[%s1 + $0xb8] sm:$0xf]
    %v126 = vld [vmem:[%s1 + $0xbc] sm:$0xf]
    %v127 = vld [vmem:[%s1 + $0xc0] sm:$0xf]
    %v128 = vld [vmem:[%s1 + $0xc4] sm:$0xf]
    %v129 = vld [vmem:[%s1 + $0xc8] sm:$0xf]
    %v130 = vld [vmem:[%s1 + $0xcc] sm:$0xf]
    %v131 = vld [vmem:[%s1 + $0xd0] sm:$0xf]
    %v132 = vld [vmem:[%s1 + $0xd4] sm:$0xf]
    %v133 = vld [vmem:[%s1 + $0xd8] sm:$0xf]
    %v134 = vld [vmem:[%s1 + $0xdc] sm:$0xf]
    %v135 = vld [vmem:[%s1 + $0xe0] sm:$0xf]
    %v136 = vld [vmem:[%s1 + $0xe4] sm:$0xf]
    %v137 = vld [vmem:[%s1 + $0xe8] sm:$0xf]
    %v138 = vld [vmem:[%s1 + $0xec] sm:$0xf]
    %v139 = vld [vmem:[%s1 + $0xf0] sm:$0xf]
    %v140 = vld [vmem:[%s1 + $0xf4] sm:$0xf]
    %v141 = vld [vmem:[%s1 + $0xf8] sm:$0xf]
    %v142 = vld [vmem:[%s1 + $0xfc] sm:$0xf]
    %v143 = vld [vmem:[%s1 + $0x100] sm:$0xf]
    %v144 = vld [vmem:[%s1 + $0x104] sm:$0xf]
    %v145 = vld [vmem:[%s1 + $0x108] sm:$0xf]
    %v146 = vld [vmem:[%s1 + $0x10c] sm:$0xf]
    %v147 = vld [vmem:[%s1 + $0x110] sm:$0xf]
    %v148 = vld [vmem:[%s1 + $0x114] sm:$0xf]
    %v149 = vld [vmem:[%s1 + $0x118] sm:$0xf]
    %v150 = vld [vmem:[%s1 + $0x11c] sm:$0xf]
    %v151 = vld [vmem:[%s1 + $0x120] sm:$0xf]
    %v152 = vld [vmem:[%s1 + $0x124] sm:$0xf]
    %v153 = vld [vmem:[%s1 + $0x128] sm:$0xf]
    %v154 = vld [vmem:[%s1 + $0x12c] sm:$0xf]
    %v155 = vld [vmem:[%s1 + $0x130] sm:$0xf]
    %v156 = vld [vmem:[%s1 + $0x134] sm:$0xf]
    %v157 = vld [vmem:[%s1 + $0x138] sm:$0xf]
    %v158 = vld [vmem:[%s1 + $0x13c] sm:$0xf]
    %v159 = vld [vmem:[%s1 + $0x140] sm:$0xf]
    %v160 = vld [vmem:[%s1 + $0x144] sm:$0xf]
    %v161 = vld [vmem:[%s1 + $0x148] sm:$0xf]
    %v162 = vld [vmem:[%s1 + $0x14c] sm:$0xf]
    %v163 = vld [vmem:[%s1 + $0x150] sm:$0xf]
    %v164 = vld [vmem:[%s1 + $0x154] sm:$0xf]
    %v165 = vld [vmem:[%s1 + $0x158] sm:$0xf]
    %v166 = vld [vmem:[%s1 + $0x15c] sm:$0xf]
    %v167 = vld [vmem:[%s1 + $0x160] sm:$0xf]
    %v168 = vld [vmem:[%s1 + $0x164] sm:$0xf]
    %v169 = vld [vmem:[%s1 + $0x168] sm:$0xf]
    %v170 = vld [vmem:[%s1 + $0x16c] sm:$0xf]
    %v171 = vld [vmem:[%s1 + $0x170] sm:$0xf]
    %v172 = vld [vmem:[%s1 + $0x174] sm:$0xf]
    %v173 = vld [vmem:[%s1 + $0x178] sm:$0xf]
    %v174 = vld [vmem:[%s1 + $0x17c] sm:$0xf]
    %v175 = vld [vmem:[%s1 + $0x180] sm:$0xf]
    %v176 = vld [vmem:[%s1 + $0x184] sm:$0xf]
    %v177 = vld [vmem:[%s2] sm:$0x1]
    %v179 = vlaneseq
    %v180 = vshrl.u32 %v179, 7
    %v181 = vsub.s32 0, %v180
    %v182 = vrot.slane %v177, %v181
    %v282 = vunpack.c.l.b16 %v79
    %v283 = vunpack.c.l.b16 %v80
    %v284 = vunpack.c.l.b16 %v81
    %v285 = vunpack.c.l.b16 %v82
    %v286 = vunpack.c.l.b16 %v83
    %v287 = vunpack.c.l.b16 %v84
    %v288 = vunpack.c.l.b16 %v85
    %v289 = vunpack.c.l.b16 %v86
    %v290 = vunpack.c.l.b16 %v87
    %v291 = vunpack.c.l.b16 %v88
    %v292 = vunpack.c.l.b16 %v89
    %v293 = vunpack.c.l.b16 %v90
    %v294 = vunpack.c.l.b16 %v91
    %v295 = vunpack.c.l.b16 %v92
    %v296 = vunpack.c.l.b16 %v93
    %v297 = vunpack.c.l.b16 %v94
    %v298 = vunpack.c.l.b16 %v95
    %v299 = vunpack.c.l.b16 %v96
    %v300 = vunpack.c.l.b16 %v97
    %v301 = vunpack.c.l.b16 %v98
    %v302 = vunpack.c.l.b16 %v99
    %v303 = vunpack.c.l.b16 %v100
    %v304 = vunpack.c.l.b16 %v101
    %v305 = vunpack.c.l.b16 %v102
    %v306 = vunpack.c.l.b16 %v103
    %v307 = vunpack.c.l.b16 %v104
    %v308 = vunpack.c.l.b16 %v105
    %v309 = vunpack.c.l.b16 %v106
    %v310 = vunpack.c.l.b16 %v107
    %v311 = vunpack.c.l.b16 %v108
    %v312 = vunpack.c.l.b16 %v109
    %v313 = vunpack.c.l.b16 %v110
    %v314 = vunpack.c.l.b16 %v111
    %v315 = vunpack.c.l.b16 %v112
    %v316 = vunpack.c.l.b16 %v113
    %v317 = vunpack.c.l.b16 %v114
    %v318 = vunpack.c.l.b16 %v115
    %v319 = vunpack.c.l.b16 %v116
    %v320 = vunpack.c.l.b16 %v117
    %v321 = vunpack.c.l.b16 %v118
    %v322 = vunpack.c.l.b16 %v119
    %v323 = vunpack.c.l.b16 %v120
    %v324 = vunpack.c.l.b16 %v121
    %v325 = vunpack.c.l.b16 %v122
    %v326 = vunpack.c.l.b16 %v123
    %v327 = vunpack.c.l.b16 %v124
    %v328 = vunpack.c.l.b16 %v125
    %v329 = vunpack.c.l.b16 %v126
    %v330 = vunpack.c.l.b16 %v127
    %v331 = vunpack.c.l.b16 %v128
    %v332 = vunpack.c.l.b16 %v129
    %v333 = vunpack.c.l.b16 %v130
    %v334 = vunpack.c.l.b16 %v131
    %v335 = vunpack.c.l.b16 %v132
    %v336 = vunpack.c.l.b16 %v133
    %v337 = vunpack.c.l.b16 %v134
    %v338 = vunpack.c.l.b16 %v135
    %v339 = vunpack.c.l.b16 %v136
    %v340 = vunpack.c.l.b16 %v137
    %v341 = vunpack.c.l.b16 %v138
    %v342 = vunpack.c.l.b16 %v139
    %v343 = vunpack.c.l.b16 %v140
    %v344 = vunpack.c.l.b16 %v141
    %v345 = vunpack.c.l.b16 %v142
    %v346 = vunpack.c.l.b16 %v143
    %v347 = vunpack.c.l.b16 %v144
    %v348 = vunpack.c.l.b16 %v145
    %v349 = vunpack.c.l.b16 %v146
    %v350 = vunpack.c.l.b16 %v147
    %v351 = vunpack.c.l.b16 %v148
    %v352 = vunpack.c.l.b16 %v149
    %v353 = vunpack.c.l.b16 %v150
    %v354 = vunpack.c.l.b16 %v151
    %v355 = vunpack.c.l.b16 %v152
    %v356 = vunpack.c.l.b16 %v153
    %v357 = vunpack.c.l.b16 %v154
    %v358 = vunpack.c.l.b16 %v155
    %v359 = vunpack.c.l.b16 %v156
    %v360 = vunpack.c.l.b16 %v157
    %v361 = vunpack.c.l.b16 %v158
    %v362 = vunpack.c.l.b16 %v159
    %v363 = vunpack.c.l.b16 %v160
    %v364 = vunpack.c.l.b16 %v161
    %v365 = vunpack.c.l.b16 %v162
    %v366 = vunpack.c.l.b16 %v163
    %v367 = vunpack.c.l.b16 %v164
    %v368 = vunpack.c.l.b16 %v165
    %v369 = vunpack.c.l.b16 %v166
    %v370 = vunpack.c.l.b16 %v167
    %v371 = vunpack.c.l.b16 %v168
    %v372 = vunpack.c.l.b16 %v169
    %v373 = vunpack.c.l.b16 %v170
    %v374 = vunpack.c.l.b16 %v171
    %v375 = vunpack.c.l.b16 %v172
    %v376 = vunpack.c.l.b16 %v173
    %v377 = vunpack.c.l.b16 %v174
    %v378 = vunpack.c.l.b16 %v175
    %v379 = vunpack.c.l.b16 %v176
    %v380 = vpack.c.b16 %v283, %v282
    %v381 = vpack.c.b16 %v285, %v284
    %v382 = vpack.c.b16 %v287, %v286
    %v383 = vpack.c.b16 %v289, %v288
    %v384 = vpack.c.b16 %v291, %v290
    %v385 = vpack.c.b16 %v293, %v292
    %v386 = vpack.c.b16 %v295, %v294
    %v387 = vpack.c.b16 %v297, %v296
    %v388 = vpack.c.b16 %v299, %v298
    %v389 = vpack.c.b16 %v301, %v300
    %v390 = vpack.c.b16 %v303, %v302
    %v391 = vpack.c.b16 %v305, %v304
    %v392 = vpack.c.b16 %v307, %v306
    %v393 = vpack.c.b16 %v309, %v308
    %v394 = vpack.c.b16 %v311, %v310
    %v395 = vpack.c.b16 %v313, %v312
    %v396 = vpack.c.b16 %v315, %v314
    %v397 = vpack.c.b16 %v317, %v316
    %v398 = vpack.c.b16 %v319, %v318
    %v399 = vpack.c.b16 %v321, %v320
    %v400 = vpack.c.b16 %v323, %v322
    %v401 = vpack.c.b16 %v325, %v324
    %v402 = vpack.c.b16 %v327, %v326
    %v403 = vpack.c.b16 %v329, %v328
    %v404 = vpack.c.b16 %v331, %v330
    %v405 = vpack.c.b16 %v333, %v332
    %v406 = vpack.c.b16 %v335, %v334
    %v407 = vpack.c.b16 %v337, %v336
    %v408 = vpack.c.b16 %v339, %v338
    %v409 = vpack.c.b16 %v341, %v340
    %v410 = vpack.c.b16 %v343, %v342
    %v411 = vpack.c.b16 %v345, %v344
    %v412 = vpack.c.b16 %v347, %v346
    %v413 = vpack.c.b16 %v349, %v348
    %v414 = vpack.c.b16 %v351, %v350
    %v415 = vpack.c.b16 %v353, %v352
    %v416 = vpack.c.b16 %v355, %v354
    %v417 = vpack.c.b16 %v357, %v356
    %v418 = vpack.c.b16 %v359, %v358
    %v419 = vpack.c.b16 %v361, %v360
    %v420 = vpack.c.b16 %v363, %v362
    %v421 = vpack.c.b16 %v365, %v364
    %v422 = vpack.c.b16 %v367, %v366
    %v423 = vpack.c.b16 %v369, %v368
    %v424 = vpack.c.b16 %v371, %v370
    %v425 = vpack.c.b16 %v373, %v372
    %v426 = vpack.c.b16 %v375, %v374
    %v427 = vpack.c.b16 %v377, %v376
    %v428 = vpack.c.b16 %v379, %v378
    %vm478 = vcmask 130048
    %v480 = vsel %vm478, %v78, 0
    %482 = vmatprep.subr.bf16.mxu0 0
    %483 = vmatpush1.bf16.msra.mxu0 %v380
    %484 = vmatprep.subr.bf16.mxu0 0
    %485 = vmatpush1.bf16.msra.mxu0 %v381
    %486 = vmatprep.subr.bf16.mxu0 0
    %487 = vmatpush1.bf16.msra.mxu0 %v382
    %488 = vmatprep.subr.bf16.mxu0 0
    %489 = vmatpush1.bf16.msra.mxu0 %v383
    %490 = vmatprep.subr.bf16.mxu0 0
    %491 = vmatpush1.bf16.msra.mxu0 %v384
    %492 = vmatprep.subr.bf16.mxu0 0
    %493 = vmatpush1.bf16.msra.mxu0 %v385
    %494 = vmatprep.subr.bf16.mxu0 0
    %495 = vmatpush1.bf16.msra.mxu0 %v386
    %496 = vmatprep.subr.bf16.mxu0 0
    %497 = vmatpush1.bf16.msra.mxu0 %v387
    %498 = vmatprep.subr.bf16.mxu0 0
    %499 = vmatpush1.bf16.msra.mxu0 %v388
    %500 = vmatprep.subr.bf16.mxu0 0
    %501 = vmatpush1.bf16.msra.mxu0 %v389
    %502 = vmatprep.subr.bf16.mxu0 0
    %503 = vmatpush1.bf16.msra.mxu0 %v390
    %504 = vmatprep.subr.bf16.mxu0 0
    %505 = vmatpush1.bf16.msra.mxu0 %v391
    %506 = vmatprep.subr.bf16.mxu0 0
    %507 = vmatpush1.bf16.msra.mxu0 %v392
    %508 = vmatprep.subr.bf16.mxu0 0
    %509 = vmatpush1.bf16.msra.mxu0 %v393
    %510 = vmatprep.subr.bf16.mxu0 0
    %511 = vmatpush1.bf16.msra.mxu0 %v394
    %512 = vmatprep.subr.bf16.mxu0 0
    %513 = vmatpush1.bf16.msra.mxu0 %v395
    %514 = vmatprep.mubr.bf16.mxu0 %v73
    %515 = vmatmul.mubr.bf16.gmra.mrb[0].mxu0 %v72
    %v516 = vpop.f32.mrb[0].mxu0
    %v517 = vadd.f32 %v182, %v516
    %v518 = vpop.f32.mrb[0].mxu0
    %v519 = vpop.f32.mrb[0].mxu0
    %v520 = vpop.f32.mrb[0].mxu0
    %521 = vdwg.mxu0
    %522 = vmatprep.subr.bf16.mxu0 0
    %523 = vmatpush1.bf16.msra.mxu0 %v396
    %524 = vmatprep.subr.bf16.mxu0 0
    %525 = vmatpush1.bf16.msra.mxu0 %v397
    %526 = vmatprep.subr.bf16.mxu0 0
    %527 = vmatpush1.bf16.msra.mxu0 %v398
    %528 = vmatprep.subr.bf16.mxu0 0
    %529 = vmatpush1.bf16.msra.mxu0 %v399
    %530 = vmatprep.subr.bf16.mxu0 0
    %531 = vmatpush1.bf16.msra.mxu0 %v400
    %532 = vmatprep.subr.bf16.mxu0 0
    %533 = vmatpush1.bf16.msra.mxu0 %v401
    %534 = vmatprep.subr.bf16.mxu0 0
    %535 = vmatpush1.bf16.msra.mxu0 %v402
    %536 = vmatprep.subr.bf16.mxu0 0
    %537 = vmatpush1.bf16.msra.mxu0 %v403
    %538 = vmatprep.subr.bf16.mxu0 0
    %539 = vmatpush1.bf16.msra.mxu0 %v404
    %540 = vmatprep.subr.bf16.mxu0 0
    %541 = vmatpush1.bf16.msra.mxu0 %v405
    %542 = vmatprep.subr.bf16.mxu0 0
    %543 = vmatpush1.bf16.msra.mxu0 %v406
    %544 = vmatprep.subr.bf16.mxu0 0
    %545 = vmatpush1.bf16.msra.mxu0 %v407
    %546 = vmatprep.subr.bf16.mxu0 0
    %547 = vmatpush1.bf16.msra.mxu0 %v408
    %548 = vmatprep.subr.bf16.mxu0 0
    %549 = vmatpush1.bf16.msra.mxu0 %v409
    %550 = vmatprep.subr.bf16.mxu0 0
    %551 = vmatpush1.bf16.msra.mxu0 %v410
    %552 = vmatprep.subr.bf16.mxu0 0
    %553 = vmatpush1.bf16.msra.mxu0 %v411
    %554 = vmatprep.mubr.bf16.mxu0 %v75
    %555 = vmatmul.mubr.bf16.gmra.mrb[0].mxu0 %v74
    %v556 = vpop.f32.mrb[0].mxu0
    %v557 = vadd.f32 %v517, %v556
    %v558 = vpop.f32.mrb[0].mxu0
    %v559 = vpop.f32.mrb[0].mxu0
    %v560 = vpop.f32.mrb[0].mxu0
    %561 = vdwg.mxu0
    %562 = vmatprep.subr.bf16.mxu0 0
    %563 = vmatpush1.bf16.msra.mxu0 %v412
    %564 = vmatprep.subr.bf16.mxu0 0
    %565 = vmatpush1.bf16.msra.mxu0 %v413
    %566 = vmatprep.subr.bf16.mxu0 0
    %567 = vmatpush1.bf16.msra.mxu0 %v414
    %568 = vmatprep.subr.bf16.mxu0 0
    %569 = vmatpush1.bf16.msra.mxu0 %v415
    %570 = vmatprep.subr.bf16.mxu0 0
    %571 = vmatpush1.bf16.msra.mxu0 %v416
    %572 = vmatprep.subr.bf16.mxu0 0
    %573 = vmatpush1.bf16.msra.mxu0 %v417
    %574 = vmatprep.subr.bf16.mxu0 0
    %575 = vmatpush1.bf16.msra.mxu0 %v418
    %576 = vmatprep.subr.bf16.mxu0 0
    %577 = vmatpush1.bf16.msra.mxu0 %v419
    %578 = vmatprep.subr.bf16.mxu0 0
    %579 = vmatpush1.bf16.msra.mxu0 %v420
    %580 = vmatprep.subr.bf16.mxu0 0
    %581 = vmatpush1.bf16.msra.mxu0 %v421
    %582 = vmatprep.subr.bf16.mxu0 0
    %583 = vmatpush1.bf16.msra.mxu0 %v422
    %584 = vmatprep.subr.bf16.mxu0 0
    %585 = vmatpush1.bf16.msra.mxu0 %v423
    %586 = vmatprep.subr.bf16.mxu0 0
    %587 = vmatpush1.bf16.msra.mxu0 %v424
    %588 = vmatprep.subr.bf16.mxu0 0
    %589 = vmatpush1.bf16.msra.mxu0 %v425
    %590 = vmatprep.subr.bf16.mxu0 0
    %591 = vmatpush1.bf16.msra.mxu0 %v426
    %592 = vmatprep.subr.bf16.mxu0 0
    %593 = vmatpush1.bf16.msra.mxu0 %v427
    %594 = vmatprep.mubr.bf16.mxu0 %v77
    %595 = vmatmul.mubr.bf16.gmra.mrb[0].mxu0 %v76
    %v596 = vpop.f32.mrb[0].mxu0
    %v597 = vadd.f32 %v557, %v596
    %v598 = vpop.f32.mrb[0].mxu0
    %v599 = vpop.f32.mrb[0].mxu0
    %v600 = vpop.f32.mrb[0].mxu0
    %601 = vdwg.mxu0
    %602 = vmatprep.subr.bf16.mxu0 0
    %603 = vmatpush1.bf16.msra.mxu0 %v428
    %604 = vmatprep.subr.bf16.mxu0 0
    %605 = vmatpush1.bf16.msra.mxu0 0
    %606 = vmatprep.subr.bf16.mxu0 0
    %607 = vmatpush1.bf16.msra.mxu0 0
    %608 = vmatprep.subr.bf16.mxu0 0
    %609 = vmatpush1.bf16.msra.mxu0 0
    %610 = vmatprep.subr.bf16.mxu0 0
    %611 = vmatpush1.bf16.msra.mxu0 0
    %612 = vmatprep.subr.bf16.mxu0 0
    %613 = vmatpush1.bf16.msra.mxu0 0
    %614 = vmatprep.subr.bf16.mxu0 0
    %615 = vmatpush1.bf16.msra.mxu0 0
    %616 = vmatprep.subr.bf16.mxu0 0
    %617 = vmatpush1.bf16.msra.mxu0 0
    %618 = vmatprep.subr.bf16.mxu0 0
    %619 = vmatpush1.bf16.msra.mxu0 0
    %620 = vmatprep.subr.bf16.mxu0 0
    %621 = vmatpush1.bf16.msra.mxu0 0
    %622 = vmatprep.subr.bf16.mxu0 0
    %623 = vmatpush1.bf16.msra.mxu0 0
    %624 = vmatprep.subr.bf16.mxu0 0
    %625 = vmatpush1.bf16.msra.mxu0 0
    %626 = vmatprep.subr.bf16.mxu0 0
    %627 = vmatpush1.bf16.msra.mxu0 0
    %628 = vmatprep.subr.bf16.mxu0 0
    %629 = vmatpush1.bf16.msra.mxu0 0
    %630 = vmatprep.subr.bf16.mxu0 0
    %631 = vmatpush1.bf16.msra.mxu0 0
    %632 = vmatprep.subr.bf16.mxu0 0
    %633 = vmatpush1.bf16.msra.mxu0 0
    %634 = vmatprep.mubr.bf16.mxu0 0
    %635 = vmatmul.mubr.bf16.gmra.mrb[0].mxu0 %v480
    %v636 = vpop.f32.mrb[0].mxu0
    %v637 = vadd.f32 %v597, %v636
    %v638 = vpop.f32.mrb[0].mxu0
    %v639 = vpop.f32.mrb[0].mxu0
    %v640 = vpop.f32.mrb[0].mxu0
    %641 = vdwg.mxu0
    %v642 = vmul.f32 %v637, 0.5
    %v643 = vtanh.pop %v642
    %v644 = vadd.f32 %v643, 1.0
    %v645 = vmul.f32 %v644, 0.5
    %v646 = vld [vmem:[%s3] sm:$0xff]
    %v647 = vld [vmem:[%s3 + $0x8] sm:$0xff]
    %v648 = vld [vmem:[%s3 + $0x10] sm:$0xff]
    %v649 = vld [vmem:[%s3 + $0x18] sm:$0xff]
    %v650 = vld [vmem:[%s4] sm:$0x1]
    %v652 = vlaneseq
    %v653 = vshrl.u32 %v652, 7
    %v654 = vsub.s32 0, %v653
    %v655 = vrot.slane %v650, %v654
    %vm657 = vcmask 261120
    %v659 = vsel %vm657, %v645, 0
    %661 = vmatprep.subr.mxu0 0.0
    %662 = vmatpush1.msra.mxu0 %v646
    %663 = vmatprep.subr.mxu0 0.0
    %664 = vmatpush1.msra.mxu0 %v647
    %665 = vmatprep.subr.mxu0 0.0
    %666 = vmatpush1.msra.mxu0 %v648
    %667 = vmatprep.subr.mxu0 0.0
    %668 = vmatpush1.msra.mxu0 %v649
    %669 = vmatprep.subr.mxu0 0.0
    %670 = vmatpush1.msra.mxu0 0.0
    %671 = vmatprep.subr.mxu0 0.0
    %672 = vmatpush1.msra.mxu0 0.0
    %673 = vmatprep.subr.mxu0 0.0
    %674 = vmatpush1.msra.mxu0 0.0
    %675 = vmatprep.subr.mxu0 0.0
    %676 = vmatpush1.msra.mxu0 0.0
    %677 = vmatprep.subr.mxu0 0.0
    %678 = vmatpush1.msra.mxu0 0.0
    %679 = vmatprep.subr.mxu0 0.0
    %680 = vmatpush1.msra.mxu0 0.0
    %681 = vmatprep.subr.mxu0 0.0
    %682 = vmatpush1.msra.mxu0 0.0
    %683 = vmatprep.subr.mxu0 0.0
    %684 = vmatpush1.msra.mxu0 0.0
    %685 = vmatprep.subr.mxu0 0.0
    %686 = vmatpush1.msra.mxu0 0.0
    %687 = vmatprep.subr.mxu0 0.0
    %688 = vmatpush1.msra.mxu0 0.0
    %689 = vmatprep.subr.mxu0 0.0
    %690 = vmatpush1.msra.mxu0 0.0
    %691 = vmatprep.subr.mxu0 0.0
    %692 = vmatpush1.msra.mxu0 0.0
    %693 = vmatprep.subr.mxu0 0.0
    %694 = vmatpush1.msra.mxu0 0.0
    %695 = vmatprep.subr.mxu0 0.0
    %696 = vmatpush1.msra.mxu0 0.0
    %697 = vmatprep.subr.mxu0 0.0
    %698 = vmatpush1.msra.mxu0 0.0
    %699 = vmatprep.subr.mxu0 0.0
    %700 = vmatpush1.msra.mxu0 0.0
    %701 = vmatprep.subr.mxu0 0.0
    %702 = vmatpush1.msra.mxu0 0.0
    %703 = vmatprep.subr.mxu0 0.0
    %704 = vmatpush1.msra.mxu0 0.0
    %705 = vmatprep.subr.mxu0 0.0
    %706 = vmatpush1.msra.mxu0 0.0
    %707 = vmatprep.subr.mxu0 0.0
    %708 = vmatpush1.msra.mxu0 0.0
    %709 = vmatprep.subr.mxu0 0.0
    %710 = vmatpush1.msra.mxu0 0.0
    %711 = vmatprep.subr.mxu0 0.0
    %712 = vmatpush1.msra.mxu0 0.0
    %713 = vmatprep.subr.mxu0 0.0
    %714 = vmatpush1.msra.mxu0 0.0
    %715 = vmatprep.subr.mxu0 0.0
    %716 = vmatpush1.msra.mxu0 0.0
    %717 = vmatprep.subr.mxu0 0.0
    %718 = vmatpush1.msra.mxu0 0.0
    %719 = vmatprep.subr.mxu0 0.0
    %720 = vmatpush1.msra.mxu0 0.0
    %721 = vmatprep.subr.mxu0 0.0
    %722 = vmatpush1.msra.mxu0 0.0
    %723 = vmatprep.subr.mxu0 0.0
    %724 = vmatpush1.msra.mxu0 0.0
    %725 = vmatprep.mubr.f32.mxu0 0.0
    %726 = vmatmul.mubr.f32.gmra.mrb[0].mxu0 %v659
    %v727 = vpop.f32.mrb[0].mxu0
    %v728 = vadd.f32 %v655, %v727
    %v729 = vpop.f32.mrb[0].mxu0
    %730 = vdwg.mxu0
    %v731 = vmul.f32 %v728, 0.5
    %v732 = vtanh.pop %v731
    %v733 = vadd.f32 %v732, 1.0
    %v734 = vmul.f32 %v733, 0.5
    %v735 = vld [vmem:[%s5] sm:$0xff]
    %v736 = vld [vmem:[%s5 + $0x8] sm:$0xff]
    %v737 = vld [vmem:[%s6] sm:$0x1]
    %v739 = vlaneseq
    %v740 = vshrl.u32 %v739, 7
    %v741 = vsub.s32 0, %v740
    %v742 = vrot.slane %v737, %v741
    %v745 = vsel %vm478, %v734, 0
    %747 = vmatprep.subr.mxu0 0.0
    %748 = vmatpush1.msra.mxu0 %v735
    %749 = vmatprep.subr.mxu0 0.0
    %750 = vmatpush1.msra.mxu0 %v736
    %751 = vmatprep.subr.mxu0 0.0
    %752 = vmatpush1.msra.mxu0 0.0
    %753 = vmatprep.subr.mxu0 0.0
    %754 = vmatpush1.msra.mxu0 0.0
    %755 = vmatprep.subr.mxu0 0.0
    %756 = vmatpush1.msra.mxu0 0.0
    %757 = vmatprep.subr.mxu0 0.0
    %758 = vmatpush1.msra.mxu0 0.0
    %759 = vmatprep.subr.mxu0 0.0
    %760 = vmatpush1.msra.mxu0 0.0
    %761 = vmatprep.subr.mxu0 0.0
    %762 = vmatpush1.msra.mxu0 0.0
    %763 = vmatprep.subr.mxu0 0.0
    %764 = vmatpush1.msra.mxu0 0.0
    %765 = vmatprep.subr.mxu0 0.0
    %766 = vmatpush1.msra.mxu0 0.0
    %767 = vmatprep.subr.mxu0 0.0
    %768 = vmatpush1.msra.mxu0 0.0
    %769 = vmatprep.subr.mxu0 0.0
    %770 = vmatpush1.msra.mxu0 0.0
    %771 = vmatprep.subr.mxu0 0.0
    %772 = vmatpush1.msra.mxu0 0.0
    %773 = vmatprep.subr.mxu0 0.0
    %774 = vmatpush1.msra.mxu0 0.0
    %775 = vmatprep.subr.mxu0 0.0
    %776 = vmatpush1.msra.mxu0 0.0
    %777 = vmatprep.subr.mxu0 0.0
    %778 = vmatpush1.msra.mxu0 0.0
    %779 = vmatprep.subr.mxu0 0.0
    %780 = vmatpush1.msra.mxu0 0.0
    %781 = vmatprep.subr.mxu0 0.0
    %782 = vmatpush1.msra.mxu0 0.0
    %783 = vmatprep.subr.mxu0 0.0
    %784 = vmatpush1.msra.mxu0 0.0
    %785 = vmatprep.subr.mxu0 0.0
    %786 = vmatpush1.msra.mxu0 0.0
    %787 = vmatprep.subr.mxu0 0.0
    %788 = vmatpush1.msra.mxu0 0.0
    %789 = vmatprep.subr.mxu0 0.0
    %790 = vmatpush1.msra.mxu0 0.0
    %791 = vmatprep.subr.mxu0 0.0
    %792 = vmatpush1.msra.mxu0 0.0
    %793 = vmatprep.subr.mxu0 0.0
    %794 = vmatpush1.msra.mxu0 0.0
    %795 = vmatprep.subr.mxu0 0.0
    %796 = vmatpush1.msra.mxu0 0.0
    %797 = vmatprep.subr.mxu0 0.0
    %798 = vmatpush1.msra.mxu0 0.0
    %799 = vmatprep.subr.mxu0 0.0
    %800 = vmatpush1.msra.mxu0 0.0
    %801 = vmatprep.subr.mxu0 0.0
    %802 = vmatpush1.msra.mxu0 0.0
    %803 = vmatprep.subr.mxu0 0.0
    %804 = vmatpush1.msra.mxu0 0.0
    %805 = vmatprep.subr.mxu0 0.0
    %806 = vmatpush1.msra.mxu0 0.0
    %807 = vmatprep.subr.mxu0 0.0
    %808 = vmatpush1.msra.mxu0 0.0
    %809 = vmatprep.subr.mxu0 0.0
    %810 = vmatpush1.msra.mxu0 0.0
    %811 = vmatprep.mubr.f32.mxu0 0.0
    %812 = vmatmul.mubr.f32.gmra.mrb[0].mxu0 %v745
    %v813 = vpop.f32.mrb[0].mxu0
    %v814 = vadd.f32 %v742, %v813
    %v815 = vpop.f32.mrb[0].mxu0
    %816 = vdwg.mxu0
    %v817 = vmul.f32 %v814, 0.5
    %v818 = vtanh.pop %v817
    %v819 = vadd.f32 %v818, 1.0
    %v820 = vmul.f32 %v819, 0.5
    %vm821 = vcmask 74752
    %822 = vst.msk [vmem:[#allocation2] sm:$0x3] %vm821, %v820
    // Predicated region
    $region30: #{tpu_custom_call.1} parent=1 // pred_check
      _
    $region31: #{tpu_custom_call.1} parent=1 // pred_check_branch
      %824 = sbr.rel (0) target = $region33
    $region32: #{tpu_custom_call.1} parent=1 // pred_region
      %s826 = ssub.s32 32, 32
      %827 = vsyncadd [#allocation3], %s826
      %s829 = sshll.u32 [#allocation2], 4
      %s830 = int_to_ptr.vmem [resolvable:$true] %s829
      %832 = dma.vmem_to_hbm [thread:$0]  %s830, 32, %s7, [#allocation3]
    $region33: #{tpu_custom_call.1} parent=1 // pred_fallthru
      _
    // Predicated region
    $region34: #{tpu_custom_call.1} parent=1 // pred_check
      _
    $region35: #{tpu_custom_call.1} parent=1 // pred_check_branch
      %834 = sbr.rel (0) target = $region37
    $region36: #{tpu_custom_call.1} parent=1 // pred_region
      %835 = dma.done [#allocation3], 32
    $region37: #{tpu_custom_call.1} parent=1 // pred_fallthru
      _
    %836 = vsyncpa [#allocation3], 1

</llo_original>
